<compile_context>
chip_gen: v5e
topology: v5e:2x2
jax: 0.10.0
libtpu: 0.0.40
codegen_flags: <defaults>
</compile_context>

<pallas_src>
import jax
import jax.numpy as jnp
from jax.experimental import pallas as pl
from jax.experimental.pallas import tpu as pltpu

IN_DIM = 5
IN_PAD = 8          # K padded 5 -> 8 (sublane-aligned load; zero pad is exact)
HIDDEN = 128
OUT_DIM = 41
BLOCK_B = 256       # batch tile; ~0.4 MiB of blocks incl. double-buffering, fits everywhere


def policy_kernel(x_ref, w1_ref, b1_ref, w2_ref, b2_ref, out_ref):
    # affine1_p + ReLU: bf16 MXU operands, f32 accumulation; elementwise in f32
    x = x_ref[...]                                                    # (TB, 8) bf16
    h = jnp.dot(x, w1_ref[...], preferred_element_type=jnp.float32)   # (TB, 128) f32
    h = jnp.maximum(h + b1_ref[...], 0.0)
    # affine2_p
    s = jnp.dot(h.astype(jnp.bfloat16), w2_ref[...],
                preferred_element_type=jnp.float32)                   # (TB, 41) f32
    s = s + b2_ref[...]
    # softmax over dim=1 (action dim), numerically stable, exact f32 normalization
    s = s - jnp.max(s, axis=-1, keepdims=True)
    e = jnp.exp(s)
    denom = jnp.sum(e, axis=-1, keepdims=True)
    out_ref[...] = e / denom


def prepare_params(w1, b1, w2, b2):
    """One-time layout/dtype prep: zero-pad K 5->8, cast weights to bf16, biases f32."""
    w1p = jnp.zeros((IN_PAD, HIDDEN), jnp.bfloat16).at[:IN_DIM].set(w1.astype(jnp.bfloat16))
    w2p = w2.astype(jnp.bfloat16)
    return w1p, b1.astype(jnp.float32), w2p, b2.astype(jnp.float32)


def policy_forward(x, w1p, b1, w2p, b2, *, block_b=BLOCK_B):
    B = x.shape[0]
    nb = pl.cdiv(B, block_b)
    b_pad = nb * block_b
    # pad batch to a block multiple and features 5 -> 8 (zeros are exact no-ops)
    x_p = jnp.zeros((b_pad, IN_PAD), jnp.bfloat16).at[:B, :IN_DIM].set(x.astype(jnp.bfloat16))

    out = pl.pallas_call(
        policy_kernel,
        out_shape=jax.ShapeDtypeStruct((b_pad, OUT_DIM), jnp.float32),
        grid=(nb,),
        in_specs=[
            pl.BlockSpec((block_b, IN_PAD), lambda i: (i, 0)),   # activations: streamed
            pl.BlockSpec((IN_PAD, HIDDEN), lambda i: (0, 0)),    # weights/biases: constant
            pl.BlockSpec((1, HIDDEN), lambda i: (0, 0)),         #   index_map -> VMEM-resident
            pl.BlockSpec((HIDDEN, OUT_DIM), lambda i: (0, 0)),
            pl.BlockSpec((1, OUT_DIM), lambda i: (0, 0)),
        ],
        out_specs=pl.BlockSpec((block_b, OUT_DIM), lambda i: (i, 0)),
        compiler_params=pltpu.CompilerParams(
            dimension_semantics=("parallel",),   # shard batch tiles across v7x's 2 TCs
        ),
    )(x_p, w1p, b1, w2p, b2)
    return out[:B]


def init_params(key):
    # Deterministic init mimicking PyTorch nn.Linear defaults:
    # weight, bias ~ U(-1/sqrt(fan_in), 1/sqrt(fan_in))
    k1, k2, k3, k4 = jax.random.split(key, 4)
    bound1 = 1.0 / (IN_DIM ** 0.5)
    bound2 = 1.0 / (HIDDEN ** 0.5)
    w1 = jax.random.uniform(k1, (IN_DIM, HIDDEN), jnp.float32, -bound1, bound1)
    b1 = jax.random.uniform(k2, (1, HIDDEN), jnp.float32, -bound1, bound1)
    w2 = jax.random.uniform(k3, (HIDDEN, OUT_DIM), jnp.float32, -bound2, bound2)
    b2 = jax.random.uniform(k4, (1, OUT_DIM), jnp.float32, -bound2, bound2)
    return w1, b1, w2, b2


if __name__ == "__main__":
    key = jax.random.PRNGKey(0)
    kx, kp = jax.random.split(key)
    B = 384  # exercises grid=2 and the batch-padding path, still small
    x = jax.random.normal(kx, (B, IN_DIM), jnp.float32)
    w1, b1, w2, b2 = init_params(kp)
    w1p, b1f, w2p, b2f = prepare_params(w1, b1, w2, b2)

    probs = policy_forward(x, w1p, b1f, w2p, b2f)
    probs = jax.block_until_ready(probs)

    # Matched-precision reference (same bf16 operands / f32 accumulation) in plain JAX.
    xb = jnp.zeros((B, IN_PAD), jnp.bfloat16).at[:, :IN_DIM].set(x.astype(jnp.bfloat16))
    h_ref = jnp.maximum(jnp.dot(xb, w1p, preferred_element_type=jnp.float32) + b1f, 0.0)
    s_ref = jnp.dot(h_ref.astype(jnp.bfloat16), w2p, preferred_element_type=jnp.float32) + b2f
    ref_bf16 = jax.nn.softmax(s_ref, axis=1)

    # Original full-f32 module semantics.
    h32 = jnp.maximum(x @ w1 + b1, 0.0)
    ref_f32 = jax.nn.softmax(h32 @ w2 + b2, axis=1)

    assert probs.shape == (B, OUT_DIM)
    assert jnp.allclose(probs, ref_bf16, atol=2e-3), "mismatch vs matched-precision reference"
    assert jnp.allclose(probs, ref_f32, atol=1e-2), "mismatch vs f32 module reference"
    # exact f32 normalization -> rows sum to 1 to f32 rounding
    assert jnp.allclose(jnp.sum(probs, axis=1), 1.0, atol=1e-4)

    print("KERNEL_OK")
</pallas_src>

<mosaic_0001>
module attributes {stable_mosaic.version = 11 : i64} {
  func.func @policy_kernel(%arg0: i32, %arg1: memref<256x8xbf16, #tpu.memory_space<vmem>>, %arg2: memref<8x128xbf16, #tpu.memory_space<vmem>>, %arg3: memref<1x128xf32, #tpu.memory_space<vmem>>, %arg4: memref<128x41xbf16, #tpu.memory_space<vmem>>, %arg5: memref<1x41xf32, #tpu.memory_space<vmem>>, %arg6: memref<256x41xf32, #tpu.memory_space<vmem>>) attributes {dimension_semantics = [#tpu.dimension_semantics<parallel>], iteration_bounds = array<i64: 2>, scalar_prefetch = 0 : i64, scratch_operands = 0 : i64, tpu.core_type = #tpu.core_type<tc>, window_params = [{transform_indices = @transform_0, window_bounds = array<i64: 256, 8>}, {pipeline_mode = #tpu.pipeline_mode<synchronous>, transform_indices = @transform_1, window_bounds = array<i64: 8, 128>}, {pipeline_mode = #tpu.pipeline_mode<synchronous>, transform_indices = @transform_2, window_bounds = array<i64: 1, 128>}, {pipeline_mode = #tpu.pipeline_mode<synchronous>, transform_indices = @transform_3, window_bounds = array<i64: 128, 41>}, {pipeline_mode = #tpu.pipeline_mode<synchronous>, transform_indices = @transform_4, window_bounds = array<i64: 1, 41>}, {transform_indices = @transform_5, window_bounds = array<i64: 256, 41>}]} {
    %c0 = arith.constant 0 : index
    %c0_0 = arith.constant 0 : index
    %0 = vector.load %arg1[%c0, %c0_0] : memref<256x8xbf16, #tpu.memory_space<vmem>>, vector<256x8xbf16>
    %c0_1 = arith.constant 0 : index
    %c0_2 = arith.constant 0 : index
    %1 = vector.load %arg2[%c0_1, %c0_2] : memref<8x128xbf16, #tpu.memory_space<vmem>>, vector<8x128xbf16>
    %cst = arith.constant dense<0.000000e+00> : vector<256x128xf32>
    %2 = tpu.matmul %0, %1, %cst {dimension_numbers = #tpu.dot_dimension_numbers<[1], [0], [0], [1], [0, 0, 1, 1], [], []>} : vector<256x8xbf16>, vector<8x128xbf16>, vector<256x128xf32> -> vector<256x128xf32>
    %c0_3 = arith.constant 0 : index
    %c0_4 = arith.constant 0 : index
    %3 = vector.load %arg3[%c0_3, %c0_4] : memref<1x128xf32, #tpu.memory_space<vmem>>, vector<1x128xf32>
    %4 = vector.broadcast %3 : vector<1x128xf32> to vector<256x128xf32>
    %5 = arith.addf %2, %4 : vector<256x128xf32>
    %cst_5 = arith.constant 0.000000e+00 : f32
    %6 = vector.broadcast %cst_5 : f32 to vector<256x128xf32>
    %7 = arith.maximumf %5, %6 : vector<256x128xf32>
    %8 = arith.truncf %7 : vector<256x128xf32> to vector<256x128xbf16>
    %c0_6 = arith.constant 0 : index
    %c0_7 = arith.constant 0 : index
    %9 = vector.load %arg4[%c0_6, %c0_7] : memref<128x41xbf16, #tpu.memory_space<vmem>>, vector<128x41xbf16>
    %cst_8 = arith.constant dense<0.000000e+00> : vector<256x41xf32>
    %10 = tpu.matmul %8, %9, %cst_8 {dimension_numbers = #tpu.dot_dimension_numbers<[1], [0], [0], [1], [0, 0, 1, 1], [], []>} : vector<256x128xbf16>, vector<128x41xbf16>, vector<256x41xf32> -> vector<256x41xf32>
    %c0_9 = arith.constant 0 : index
    %c0_10 = arith.constant 0 : index
    %11 = vector.load %arg5[%c0_9, %c0_10] : memref<1x41xf32, #tpu.memory_space<vmem>>, vector<1x41xf32>
    %12 = vector.broadcast %11 : vector<1x41xf32> to vector<256x41xf32>
    %13 = arith.addf %10, %12 : vector<256x41xf32>
    %cst_11 = arith.constant dense<0xFF800000> : vector<256xf32>
    %14 = vector.multi_reduction <maximumf>, %13, %cst_11 [1] : vector<256x41xf32> to vector<256xf32>
    %15 = vector.shape_cast %14 : vector<256xf32> to vector<256x1xf32>
    %16 = vector.broadcast %15 : vector<256x1xf32> to vector<256x41xf32>
    %17 = arith.subf %13, %16 : vector<256x41xf32>
    %18 = math.exp %17 : vector<256x41xf32>
    %cst_12 = arith.constant dense<0.000000e+00> : vector<256xf32>
    %19 = vector.multi_reduction <add>, %18, %cst_12 [1] : vector<256x41xf32> to vector<256xf32>
    %20 = vector.shape_cast %19 : vector<256xf32> to vector<256x1xf32>
    %21 = vector.broadcast %20 : vector<256x1xf32> to vector<256x41xf32>
    %22 = arith.divf %18, %21 : vector<256x41xf32>
    %c0_13 = arith.constant 0 : index
    %c0_14 = arith.constant 0 : index
    %23 = vector.load %arg6[%c0_13, %c0_14] : memref<256x41xf32, #tpu.memory_space<vmem>>, vector<256x41xf32>
    tpu.vector_store %arg6[%c0_13, %c0_14], %22 {strides = array<i32>} : memref<256x41xf32, #tpu.memory_space<vmem>>, vector<256x41xf32>,
    return
  }
  func.func @transform_0(%arg0: i32) -> (i32, i32) {
    %c0_i32 = arith.constant 0 : i32
    %c0_i32_0 = arith.constant 0 : i32
    return %arg0, %c0_i32 : i32, i32
  }
  func.func @transform_1(%arg0: i32) -> (i32, i32) {
    %c0_i32 = arith.constant 0 : i32
    %c0_i32_0 = arith.constant 0 : i32
    %c0_i32_1 = arith.constant 0 : i32
    return %c0_i32, %c0_i32_0 : i32, i32
  }
  func.func @transform_2(%arg0: i32) -> (i32, i32) {
    %c0_i32 = arith.constant 0 : i32
    %c0_i32_0 = arith.constant 0 : i32
    %c0_i32_1 = arith.constant 0 : i32
    return %c0_i32, %c0_i32_0 : i32, i32
  }
  func.func @transform_3(%arg0: i32) -> (i32, i32) {
    %c0_i32 = arith.constant 0 : i32
    %c0_i32_0 = arith.constant 0 : i32
    %c0_i32_1 = arith.constant 0 : i32
    return %c0_i32, %c0_i32_0 : i32, i32
  }
  func.func @transform_4(%arg0: i32) -> (i32, i32) {
    %c0_i32 = arith.constant 0 : i32
    %c0_i32_0 = arith.constant 0 : i32
    %c0_i32_1 = arith.constant 0 : i32
    return %c0_i32, %c0_i32_0 : i32, i32
  }
  func.func @transform_5(%arg0: i32) -> (i32, i32) {
    %c0_i32 = arith.constant 0 : i32
    %c0_i32_0 = arith.constant 0 : i32
    return %arg0, %c0_i32 : i32, i32
  }
}

</mosaic_0001>

<llo_original>
// kernel: tpu_custom_call.1
$region0: #{tpu_custom_call.1}
  #allocation0 [shape = 'u32[]', space=smem, size = 0x4, offset = 0x4, fixed_abs, tag = 'smem constant byte address 0x4 - core index']
  #allocation1 [shape = 'u32[72,128]{1,0:T(1,128)}', space=vmem, size = 0x9000, scoped, tag = 'internal scratch']
  %s0 = inlined_call_operand.vmem [shape: bf16[512,8], index: 0, kind: input, shape index: {}]
  %s1 = inlined_call_operand.vmem [shape: bf16[8,128], index: 1, kind: input, shape index: {}]
  %s2 = inlined_call_operand.vmem [shape: f32[1,128], index: 2, kind: input, shape index: {}]
  %s3 = inlined_call_operand.vmem [shape: bf16[128,41], index: 3, kind: input, shape index: {}]
  %s4 = inlined_call_operand.vmem [shape: f32[1,41], index: 4, kind: input, shape index: {}]
  %s5 = inlined_call_operand.vmem [shape: f32[512,41], index: 5, kind: output, shape index: {}]
  %s6 = sld [smem:[#allocation0]]
  $region53: #{tpu_custom_call.1} parent=0
    _
  %s8 = ssub.s32 1, %s6
  %s9 = scalar_select 0, %s8, %s6
  loop: start=0, step=1, limit=4
  $region2: #{tpu_custom_call.1} parent=0 // loop_pre_header
    _
  $region3: #{tpu_custom_call.1} parent=0 // loop_header
    %s11 = sphi 0, %s15
    %p12 = scmp.ge.s32.totalorder %s11, 4
    %s21 = sphi 0, %s23
    %s24 = sphi 0, %s21
    %s25 = sphi 0, %s24
    %s41 = sphi 0, %s25
    %s45 = sphi 0, %s45
    %s47 = sphi 0, %s45
    %s48 = sphi 0, %s47
    %s62 = sphi 0, %s48
    %s66 = sphi 0, %s66
    %s68 = sphi 0, %s66
    %s69 = sphi 0, %s68
    %s83 = sphi 0, %s69
    %s87 = sphi 0, %s87
    %s89 = sphi 0, %s87
    %s90 = sphi 0, %s89
    %s104 = sphi 0, %s90
    %s108 = sphi 0, %s108
    %s110 = sphi 0, %s108
    %s111 = sphi 0, %s110
    %s125 = sphi 0, %s111
    %s131 = sphi 0, %s133
    %s134 = sphi 0, %s131
    %s135 = sphi 0, %s134
    %s151 = sphi 0, %s135
  $region4: #{tpu_custom_call.1} parent=0 // loop_header_branch
    %14 = sbr.rel (%p12) target = $region8
  $region5: #{tpu_custom_call.1} parent=0 // loop_body
    %s16 = ssub.s32 %s11, 1
    %s17 = ssub.s32 %s11, 2
    %s18 = sadd.s32 %s11, 1
    %s19 = ssub.s32 %s11, %s18
    %p20 = scmp.eq.s32.totalorder %s19, 0
    %s22 = sadd.s32 %s21, 1
    %s23 = scalar_select %p20, %s21, %s22
    %p26 = pneg %p20
    %p27 = scmp.eq.s32.totalorder %s11, 1
    %p28 = por %p26, %p27
    %p29 = scmp.ne.s32.totalorder %s21, %s24
    %p30 = scmp.eq.s32.totalorder %s11, 0
    %p31 = por %p29, %p30
    %p32 = scmp.ne.s32.totalorder %s21, %s24
    %p33 = scmp.eq.s32.totalorder %s16, 1
    %p34 = por %p32, %p33
    %p35 = scmp.ne.s32.totalorder %s24, %s25
    %p36 = scmp.eq.s32.totalorder %s16, 0
    %p37 = por %p35, %p36
    %p38 = scmp.ne.s32.totalorder %s24, %s25
    %p39 = scmp.eq.s32.totalorder %s17, 1
    %p40 = por %p38, %p39
    %p42 = scmp.ne.s32.totalorder %s25, %s41
    %p43 = scmp.eq.s32.totalorder %s17, 0
    %p44 = por %p42, %p43
    %s46 = sadd.s32 %s45, 1
    %p49 = scmp.eq.s32.totalorder %s11, 1
    %p50 = scmp.ne.s32.totalorder %s45, %s47
    %p51 = scmp.eq.s32.totalorder %s11, 0
    %p52 = por %p50, %p51
    %p53 = scmp.ne.s32.totalorder %s45, %s47
    %p54 = scmp.eq.s32.totalorder %s16, 1
    %p55 = por %p53, %p54
    %p56 = scmp.ne.s32.totalorder %s47, %s48
    %p57 = scmp.eq.s32.totalorder %s16, 0
    %p58 = por %p56, %p57
    %p59 = scmp.ne.s32.totalorder %s47, %s48
    %p60 = scmp.eq.s32.totalorder %s17, 1
    %p61 = por %p59, %p60
    %p63 = scmp.ne.s32.totalorder %s48, %s62
    %p64 = scmp.eq.s32.totalorder %s17, 0
    %p65 = por %p63, %p64
    %s67 = sadd.s32 %s66, 1
    %p70 = scmp.eq.s32.totalorder %s11, 1
    %p71 = scmp.ne.s32.totalorder %s66, %s68
    %p72 = scmp.eq.s32.totalorder %s11, 0
    %p73 = por %p71, %p72
    %p74 = scmp.ne.s32.totalorder %s66, %s68
    %p75 = scmp.eq.s32.totalorder %s16, 1
    %p76 = por %p74, %p75
    %p77 = scmp.ne.s32.totalorder %s68, %s69
    %p78 = scmp.eq.s32.totalorder %s16, 0
    %p79 = por %p77, %p78
    %p80 = scmp.ne.s32.totalorder %s68, %s69
    %p81 = scmp.eq.s32.totalorder %s17, 1
    %p82 = por %p80, %p81
    %p84 = scmp.ne.s32.totalorder %s69, %s83
    %p85 = scmp.eq.s32.totalorder %s17, 0
    %p86 = por %p84, %p85
    %s88 = sadd.s32 %s87, 1
    %p91 = scmp.eq.s32.totalorder %s11, 1
    %p92 = scmp.ne.s32.totalorder %s87, %s89
    %p93 = scmp.eq.s32.totalorder %s11, 0
    %p94 = por %p92, %p93
    %p95 = scmp.ne.s32.totalorder %s87, %s89
    %p96 = scmp.eq.s32.totalorder %s16, 1
    %p97 = por %p95, %p96
    %p98 = scmp.ne.s32.totalorder %s89, %s90
    %p99 = scmp.eq.s32.totalorder %s16, 0
    %p100 = por %p98, %p99
    %p101 = scmp.ne.s32.totalorder %s89, %s90
    %p102 = scmp.eq.s32.totalorder %s17, 1
    %p103 = por %p101, %p102
    %p105 = scmp.ne.s32.totalorder %s90, %s104
    %p106 = scmp.eq.s32.totalorder %s17, 0
    %p107 = por %p105, %p106
    %s109 = sadd.s32 %s108, 1
    %p112 = scmp.eq.s32.totalorder %s11, 1
    %p113 = scmp.ne.s32.totalorder %s108, %s110
    %p114 = scmp.eq.s32.totalorder %s11, 0
    %p115 = por %p113, %p114
    %p116 = scmp.ne.s32.totalorder %s108, %s110
    %p117 = scmp.eq.s32.totalorder %s16, 1
    %p118 = por %p116, %p117
    %p119 = scmp.ne.s32.totalorder %s110, %s111
    %p120 = scmp.eq.s32.totalorder %s16, 0
    %p121 = por %p119, %p120
    %p122 = scmp.ne.s32.totalorder %s110, %s111
    %p123 = scmp.eq.s32.totalorder %s17, 1
    %p124 = por %p122, %p123
    %p126 = scmp.ne.s32.totalorder %s111, %s125
    %p127 = scmp.eq.s32.totalorder %s17, 0
    %p128 = por %p126, %p127
    %s129 = ssub.s32 %s11, %s18
    %p130 = scmp.eq.s32.totalorder %s129, 0
    %s132 = sadd.s32 %s131, 1
    %s133 = scalar_select %p130, %s131, %s132
    %p136 = pneg %p130
    %p137 = scmp.eq.s32.totalorder %s11, 1
    %p138 = por %p136, %p137
    %p139 = scmp.ne.s32.totalorder %s131, %s134
    %p140 = scmp.eq.s32.totalorder %s11, 0
    %p141 = por %p139, %p140
    %p142 = scmp.ne.s32.totalorder %s131, %s134
    %p143 = scmp.eq.s32.totalorder %s16, 1
    %p144 = por %p142, %p143
    %p145 = scmp.ne.s32.totalorder %s134, %s135
    %p146 = scmp.eq.s32.totalorder %s16, 0
    %p147 = por %p145, %p146
    %p148 = scmp.ne.s32.totalorder %s134, %s135
    %p149 = scmp.eq.s32.totalorder %s17, 1
    %p150 = por %p148, %p149
    %p152 = scmp.ne.s32.totalorder %s135, %s151
    %p153 = scmp.eq.s32.totalorder %s17, 0
    %p154 = por %p152, %p153
    %p155 = scmp.le.s32.totalorder 1, %s11
    %p156 = scmp.lt.s32.totalorder %s11, 3
    %p157 = pnand %p155, %p156
    %p158 = pneg %p157
    // Predicated region
    $region9: #{tpu_custom_call.1} parent=5 // pred_check
      _
    $region10: #{tpu_custom_call.1} parent=5 // pred_check_branch
      %160 = sbr.rel (%p157) target = $region12
    $region11: #{tpu_custom_call.1} parent=5 // pred_region
      %s161 = ssub.s32 %s11, 1
      // Predicated region
      $region13: #{tpu_custom_call.1} parent=11 // pred_check
        %p162 = pneg %p58
      $region14: #{tpu_custom_call.1} parent=11 // pred_check_branch
        %164 = sbr.rel (%p162) target = $region16
      $region15: #{tpu_custom_call.1} parent=11 // pred_region
        _
      $region16: #{tpu_custom_call.1} parent=11 // pred_fallthru
        _
      // Predicated region
      $region17: #{tpu_custom_call.1} parent=11 // pred_check
        %p165 = pneg %p79
      $region18: #{tpu_custom_call.1} parent=11 // pred_check_branch
        %167 = sbr.rel (%p165) target = $region20
      $region19: #{tpu_custom_call.1} parent=11 // pred_region
        _
      $region20: #{tpu_custom_call.1} parent=11 // pred_fallthru
        _
      // Predicated region
      $region21: #{tpu_custom_call.1} parent=11 // pred_check
        %p168 = pneg %p100
      $region22: #{tpu_custom_call.1} parent=11 // pred_check_branch
        %170 = sbr.rel (%p168) target = $region24
      $region23: #{tpu_custom_call.1} parent=11 // pred_region
        _
      $region24: #{tpu_custom_call.1} parent=11 // pred_fallthru
        _
      // Predicated region
      $region25: #{tpu_custom_call.1} parent=11 // pred_check
        %p171 = pneg %p121
      $region26: #{tpu_custom_call.1} parent=11 // pred_check_branch
        %173 = sbr.rel (%p171) target = $region28
      $region27: #{tpu_custom_call.1} parent=11 // pred_region
        _
      $region28: #{tpu_custom_call.1} parent=11 // pred_fallthru
        _
    $region12: #{tpu_custom_call.1} parent=5 // pred_fallthru
      _
    %p174 = scmp.lt.s32.totalorder %s11, 2
    // Predicated region
    $region29: #{tpu_custom_call.1} parent=5 // pred_check
      %p175 = pneg %p174
    $region30: #{tpu_custom_call.1} parent=5 // pred_check_branch
      %177 = sbr.rel (%p175) target = $region32
    $region31: #{tpu_custom_call.1} parent=5 // pred_region
      // Predicated region
      $region33: #{tpu_custom_call.1} parent=31 // pred_check
        %p178 = pneg %p31
      $region34: #{tpu_custom_call.1} parent=31 // pred_check_branch
        %180 = sbr.rel (%p178) target = $region36
      $region35: #{tpu_custom_call.1} parent=31 // pred_region
        %s181 = smul.u32 32, %s11
        %p182 = scmp.lt.s32.totalorder %s181, 63
        %s183 = scalar_select %p182, %s181, 63
        %s184 = smul.addr %s183, 4
        %s185 = scalar_lea.vmem %s0, %s184
        %s186 = smul.u32 32, %s11
      $region36: #{tpu_custom_call.1} parent=31 // pred_fallthru
        _
    $region32: #{tpu_custom_call.1} parent=5 // pred_fallthru
      _
    %p187 = scmp.le.s32.totalorder 1, %s11
    %p188 = scmp.lt.s32.totalorder %s11, 3
    %p189 = pnand %p187, %p188
    %p190 = pneg %p189
    // Predicated region
    $region37: #{tpu_custom_call.1} parent=5 // pred_check
      _
    $region38: #{tpu_custom_call.1} parent=5 // pred_check_branch
      %192 = sbr.rel (%p189) target = $region40
    $region39: #{tpu_custom_call.1} parent=5 // pred_region
      %s193 = ssub.s32 %s11, 1
      %s194 = smul.u32 32, %s16
      %p195 = scmp.lt.s32.totalorder %s194, 63
      %s196 = scalar_select %p195, %s194, 63
      %s197 = smul.addr %s196, 4
      %s198 = scalar_lea.vmem %s0, %s197
      %p199 = pneg %p37
      %p200 = pneg %p34
      %p201 = pneg %p58
      %p202 = pneg %p55
      %p203 = pneg %p79
      %p204 = pneg %p76
      %p205 = pneg %p100
      %p206 = pneg %p97
      %p207 = pneg %p121
      %p208 = pneg %p118
      %p209 = pneg %p147
      %p210 = pneg %p144
      %s211 = smul.u32 32, %s16
      %p212 = scmp.lt.s32.totalorder %s211, 63
      %s213 = scalar_select %p212, %s211, 63
      %s214 = smul.addr %s213, 8
      %s215 = scalar_lea.vmem %s5, %s214
      %s216 = smul.u32 32, %s16
      %p217 = scmp.lt.s32.totalorder %s216, 63
      %s218 = scalar_select %p217, %s216, 63
      %s219 = smul.addr %s218, 4
      %s220 = scalar_lea.vmem %s0, %s219
      %s221 = smul.u32 32, %s16
      %s222 = smul.u32 32, %s16
      %p223 = scmp.lt.s32.totalorder %s222, 63
      %s224 = scalar_select %p223, %s222, 63
      %s225 = smul.addr %s224, 8
      %s226 = scalar_lea.vmem %s5, %s225
      %s227 = smul.u32 32, %s16
      %v229 = vld [vmem:[%s220] sm:$0xf]
      %v230 = vld [vmem:[%s220 + $0x4] sm:$0xf]
      %v231 = vld [vmem:[%s220 + $0x8] sm:$0xf]
      %v232 = vld [vmem:[%s220 + $0xc] sm:$0xf]
      %v233 = vld [vmem:[%s220 + $0x10] sm:$0xf]
      %v234 = vld [vmem:[%s220 + $0x14] sm:$0xf]
      %v235 = vld [vmem:[%s220 + $0x18] sm:$0xf]
      %v236 = vld [vmem:[%s220 + $0x1c] sm:$0xf]
      %v237 = vld [vmem:[%s220 + $0x20] sm:$0xf]
      %v238 = vld [vmem:[%s220 + $0x24] sm:$0xf]
      %v239 = vld [vmem:[%s220 + $0x28] sm:$0xf]
      %v240 = vld [vmem:[%s220 + $0x2c] sm:$0xf]
      %v241 = vld [vmem:[%s220 + $0x30] sm:$0xf]
      %v242 = vld [vmem:[%s220 + $0x34] sm:$0xf]
      %v243 = vld [vmem:[%s220 + $0x38] sm:$0xf]
      %v244 = vld [vmem:[%s220 + $0x3c] sm:$0xf]
      %v245 = vld [vmem:[%s220 + $0x40] sm:$0xf]
      %v246 = vld [vmem:[%s220 + $0x44] sm:$0xf]
      %v247 = vld [vmem:[%s220 + $0x48] sm:$0xf]
      %v248 = vld [vmem:[%s220 + $0x4c] sm:$0xf]
      %v249 = vld [vmem:[%s220 + $0x50] sm:$0xf]
      %v250 = vld [vmem:[%s220 + $0x54] sm:$0xf]
      %v251 = vld [vmem:[%s220 + $0x58] sm:$0xf]
      %v252 = vld [vmem:[%s220 + $0x5c] sm:$0xf]
      %v253 = vld [vmem:[%s220 + $0x60] sm:$0xf]
      %v254 = vld [vmem:[%s220 + $0x64] sm:$0xf]
      %v255 = vld [vmem:[%s220 + $0x68] sm:$0xf]
      %v256 = vld [vmem:[%s220 + $0x6c] sm:$0xf]
      %v257 = vld [vmem:[%s220 + $0x70] sm:$0xf]
      %v258 = vld [vmem:[%s220 + $0x74] sm:$0xf]
      %v259 = vld [vmem:[%s220 + $0x78] sm:$0xf]
      %v260 = vld [vmem:[%s220 + $0x7c] sm:$0xf]
      %v261 = vld [vmem:[%s1] sm:$0xf]
      %v262 = vld [vmem:[%s2] sm:$0x1]
      %v264 = vperm.slane %v262, 0
      %v298 = vunpack.c.l.b16 %v229
      %v299 = vunpack.c.l.b16 %v230
      %v300 = vunpack.c.l.b16 %v231
      %v301 = vunpack.c.l.b16 %v232
      %v302 = vunpack.c.l.b16 %v233
      %v303 = vunpack.c.l.b16 %v234
      %v304 = vunpack.c.l.b16 %v235
      %v305 = vunpack.c.l.b16 %v236
      %v306 = vunpack.c.l.b16 %v237
      %v307 = vunpack.c.l.b16 %v238
      %v308 = vunpack.c.l.b16 %v239
      %v309 = vunpack.c.l.b16 %v240
      %v310 = vunpack.c.l.b16 %v241
      %v311 = vunpack.c.l.b16 %v242
      %v312 = vunpack.c.l.b16 %v243
      %v313 = vunpack.c.l.b16 %v244
      %v314 = vunpack.c.l.b16 %v245
      %v315 = vunpack.c.l.b16 %v246
      %v316 = vunpack.c.l.b16 %v247
      %v317 = vunpack.c.l.b16 %v248
      %v318 = vunpack.c.l.b16 %v249
      %v319 = vunpack.c.l.b16 %v250
      %v320 = vunpack.c.l.b16 %v251
      %v321 = vunpack.c.l.b16 %v252
      %v322 = vunpack.c.l.b16 %v253
      %v323 = vunpack.c.l.b16 %v254
      %v324 = vunpack.c.l.b16 %v255
      %v325 = vunpack.c.l.b16 %v256
      %v326 = vunpack.c.l.b16 %v257
      %v327 = vunpack.c.l.b16 %v258
      %v328 = vunpack.c.l.b16 %v259
      %v329 = vunpack.c.l.b16 %v260
      %v330 = vpack.c.b16 %v299, %v298
      %v331 = vpack.c.b16 %v301, %v300
      %v332 = vpack.c.b16 %v303, %v302
      %v333 = vpack.c.b16 %v305, %v304
      %v334 = vpack.c.b16 %v307, %v306
      %v335 = vpack.c.b16 %v309, %v308
      %v336 = vpack.c.b16 %v311, %v310
      %v337 = vpack.c.b16 %v313, %v312
      %v338 = vpack.c.b16 %v315, %v314
      %v339 = vpack.c.b16 %v317, %v316
      %v340 = vpack.c.b16 %v319, %v318
      %v341 = vpack.c.b16 %v321, %v320
      %v342 = vpack.c.b16 %v323, %v322
      %v343 = vpack.c.b16 %v325, %v324
      %v344 = vpack.c.b16 %v327, %v326
      %v345 = vpack.c.b16 %v329, %v328
      %vm346 = vcmask 64512
      %v348 = vsel %vm346, %v330, 0
      %v351 = vsel %vm346, %v331, 0
      %v354 = vsel %vm346, %v332, 0
      %v357 = vsel %vm346, %v333, 0
      %v360 = vsel %vm346, %v334, 0
      %v363 = vsel %vm346, %v335, 0
      %v366 = vsel %vm346, %v336, 0
      %v369 = vsel %vm346, %v337, 0
      %v372 = vsel %vm346, %v338, 0
      %v375 = vsel %vm346, %v339, 0
      %v378 = vsel %vm346, %v340, 0
      %v381 = vsel %vm346, %v341, 0
      %v384 = vsel %vm346, %v342, 0
      %v387 = vsel %vm346, %v343, 0
      %v390 = vsel %vm346, %v344, 0
      %v393 = vsel %vm346, %v345, 0
      %vm395 = vcmask 1043456
      %v397 = vsel %vm395, %v261, 0
      %399 = vmatpush.bf16.msra.mxu0 0
      %400 = vmatpush.bf16.msra.mxu0 0
      %401 = vmatpush.bf16.msra.mxu0 0
      %402 = vmatpush.bf16.msra.mxu0 0
      %403 = vmatpush.bf16.msra.mxu0 0
      %404 = vmatpush.bf16.msra.mxu0 0
      %405 = vmatpush.bf16.msra.mxu0 0
      %406 = vmatpush.bf16.msra.mxu0 %v397
      %407 = vmatmul.bf16.gmra.mxu0 %v348
      %v408 = vpop.f32.mrf.mxu0
      %v409 = vadd.f32 %v264, %v408
      %v410 = vpop.f32.mrf.mxu0
      %v411 = vadd.f32 %v264, %v410
      %412 = vmatmul.bf16.gmra.mxu0 %v351
      %v413 = vpop.f32.mrf.mxu0
      %v414 = vadd.f32 %v264, %v413
      %v415 = vpop.f32.mrf.mxu0
      %v416 = vadd.f32 %v264, %v415
      %417 = vmatmul.bf16.gmra.mxu0 %v354
      %v418 = vpop.f32.mrf.mxu0
      %v419 = vadd.f32 %v264, %v418
      %v420 = vpop.f32.mrf.mxu0
      %v421 = vadd.f32 %v264, %v420
      %422 = vmatmul.bf16.gmra.mxu0 %v357
      %v423 = vpop.f32.mrf.mxu0
      %v424 = vadd.f32 %v264, %v423
      %v425 = vpop.f32.mrf.mxu0
      %v426 = vadd.f32 %v264, %v425
      %427 = vmatmul.bf16.gmra.mxu0 %v360
      %v428 = vpop.f32.mrf.mxu0
      %v429 = vadd.f32 %v264, %v428
      %v430 = vpop.f32.mrf.mxu0
      %v431 = vadd.f32 %v264, %v430
      %432 = vmatmul.bf16.gmra.mxu0 %v363
      %v433 = vpop.f32.mrf.mxu0
      %v434 = vadd.f32 %v264, %v433
      %v435 = vpop.f32.mrf.mxu0
      %v436 = vadd.f32 %v264, %v435
      %437 = vmatmul.bf16.gmra.mxu0 %v366
      %v438 = vpop.f32.mrf.mxu0
      %v439 = vadd.f32 %v264, %v438
      %v440 = vpop.f32.mrf.mxu0
      %v441 = vadd.f32 %v264, %v440
      %442 = vmatmul.bf16.gmra.mxu0 %v369
      %v443 = vpop.f32.mrf.mxu0
      %v444 = vadd.f32 %v264, %v443
      %v445 = vpop.f32.mrf.mxu0
      %v446 = vadd.f32 %v264, %v445
      %447 = vmatmul.bf16.gmra.mxu0 %v372
      %v448 = vpop.f32.mrf.mxu0
      %v449 = vadd.f32 %v264, %v448
      %v450 = vpop.f32.mrf.mxu0
      %v451 = vadd.f32 %v264, %v450
      %452 = vmatmul.bf16.gmra.mxu0 %v375
      %v453 = vpop.f32.mrf.mxu0
      %v454 = vadd.f32 %v264, %v453
      %v455 = vpop.f32.mrf.mxu0
      %v456 = vadd.f32 %v264, %v455
      %457 = vmatmul.bf16.gmra.mxu0 %v378
      %v458 = vpop.f32.mrf.mxu0
      %v459 = vadd.f32 %v264, %v458
      %v460 = vpop.f32.mrf.mxu0
      %v461 = vadd.f32 %v264, %v460
      %462 = vmatmul.bf16.gmra.mxu0 %v381
      %v463 = vpop.f32.mrf.mxu0
      %v464 = vadd.f32 %v264, %v463
      %v465 = vpop.f32.mrf.mxu0
      %v466 = vadd.f32 %v264, %v465
      %467 = vmatmul.bf16.gmra.mxu0 %v384
      %v468 = vpop.f32.mrf.mxu0
      %v469 = vadd.f32 %v264, %v468
      %v470 = vpop.f32.mrf.mxu0
      %v471 = vadd.f32 %v264, %v470
      %472 = vmatmul.bf16.gmra.mxu0 %v387
      %v473 = vpop.f32.mrf.mxu0
      %v474 = vadd.f32 %v264, %v473
      %v475 = vpop.f32.mrf.mxu0
      %v476 = vadd.f32 %v264, %v475
      %477 = vmatmul.bf16.gmra.mxu0 %v390
      %v478 = vpop.f32.mrf.mxu0
      %v479 = vadd.f32 %v264, %v478
      %v480 = vpop.f32.mrf.mxu0
      %v481 = vadd.f32 %v264, %v480
      %482 = vmatmul.bf16.gmra.mxu0 %v393
      %v483 = vpop.f32.mrf.mxu0
      %v484 = vadd.f32 %v264, %v483
      %v485 = vpop.f32.mrf.mxu0
      %v486 = vadd.f32 %v264, %v485
      %487 = vdwg.mxu0
      %v488 = vmax.f32 %v409, 0.0
      %v489 = vmax.f32 %v411, 0.0
      %v490 = vmax.f32 %v414, 0.0
      %v491 = vmax.f32 %v416, 0.0
      %v492 = vmax.f32 %v419, 0.0
      %v493 = vmax.f32 %v421, 0.0
      %v494 = vmax.f32 %v424, 0.0
      %v495 = vmax.f32 %v426, 0.0
      %v496 = vmax.f32 %v429, 0.0
      %v497 = vmax.f32 %v431, 0.0
      %v498 = vmax.f32 %v434, 0.0
      %v499 = vmax.f32 %v436, 0.0
      %v500 = vmax.f32 %v439, 0.0
      %v501 = vmax.f32 %v441, 0.0
      %v502 = vmax.f32 %v444, 0.0
      %v503 = vmax.f32 %v446, 0.0
      %v504 = vmax.f32 %v449, 0.0
      %v505 = vmax.f32 %v451, 0.0
      %v506 = vmax.f32 %v454, 0.0
      %v507 = vmax.f32 %v456, 0.0
      %v508 = vmax.f32 %v459, 0.0
      %v509 = vmax.f32 %v461, 0.0
      %v510 = vmax.f32 %v464, 0.0
      %v511 = vmax.f32 %v466, 0.0
      %v512 = vmax.f32 %v469, 0.0
      %v513 = vmax.f32 %v471, 0.0
      %v514 = vmax.f32 %v474, 0.0
      %v515 = vmax.f32 %v476, 0.0
      %v516 = vmax.f32 %v479, 0.0
      %v517 = vmax.f32 %v481, 0.0
      %v518 = vmax.f32 %v484, 0.0
      %v519 = vmax.f32 %v486, 0.0
      %v520 = vpack.c.bf16 %v489, %v488
      %v521 = vpack.c.bf16 %v491, %v490
      %v522 = vpack.c.bf16 %v493, %v492
      %v523 = vpack.c.bf16 %v495, %v494
      %v524 = vpack.c.bf16 %v497, %v496
      %v525 = vpack.c.bf16 %v499, %v498
      %v526 = vpack.c.bf16 %v501, %v500
      %v527 = vpack.c.bf16 %v503, %v502
      %v528 = vpack.c.bf16 %v505, %v504
      %v529 = vpack.c.bf16 %v507, %v506
      %v530 = vpack.c.bf16 %v509, %v508
      %v531 = vpack.c.bf16 %v511, %v510
      %v532 = vpack.c.bf16 %v513, %v512
      %v533 = vpack.c.bf16 %v515, %v514
      %v534 = vpack.c.bf16 %v517, %v516
      %v535 = vpack.c.bf16 %v519, %v518
      %v536 = vld [vmem:[%s3] sm:$0xf]
      %v537 = vld [vmem:[%s3 + $0x4] sm:$0xf]
      %v538 = vld [vmem:[%s3 + $0x8] sm:$0xf]
      %v539 = vld [vmem:[%s3 + $0xc] sm:$0xf]
      %v540 = vld [vmem:[%s3 + $0x10] sm:$0xf]
      %v541 = vld [vmem:[%s3 + $0x14] sm:$0xf]
      %v542 = vld [vmem:[%s3 + $0x18] sm:$0xf]
      %v543 = vld [vmem:[%s3 + $0x1c] sm:$0xf]
      %v544 = vld [vmem:[%s3 + $0x20] sm:$0xf]
      %v545 = vld [vmem:[%s3 + $0x24] sm:$0xf]
      %v546 = vld [vmem:[%s3 + $0x28] sm:$0xf]
      %v547 = vld [vmem:[%s3 + $0x2c] sm:$0xf]
      %v548 = vld [vmem:[%s3 + $0x30] sm:$0xf]
      %v549 = vld [vmem:[%s3 + $0x34] sm:$0xf]
      %v550 = vld [vmem:[%s3 + $0x38] sm:$0xf]
      %v551 = vld [vmem:[%s3 + $0x3c] sm:$0xf]
      %v552 = vld [vmem:[%s4] sm:$0x1]
      %v554 = vperm.slane %v552, 0
      %v572 = vunpack.c.l.b16 %v536
      %v573 = vunpack.c.l.b16 %v537
      %v574 = vunpack.c.l.b16 %v538
      %v575 = vunpack.c.l.b16 %v539
      %v576 = vunpack.c.l.b16 %v540
      %v577 = vunpack.c.l.b16 %v541
      %v578 = vunpack.c.l.b16 %v542
      %v579 = vunpack.c.l.b16 %v543
      %v580 = vunpack.c.l.b16 %v544
      %v581 = vunpack.c.l.b16 %v545
      %v582 = vunpack.c.l.b16 %v546
      %v583 = vunpack.c.l.b16 %v547
      %v584 = vunpack.c.l.b16 %v548
      %v585 = vunpack.c.l.b16 %v549
      %v586 = vunpack.c.l.b16 %v550
      %v587 = vunpack.c.l.b16 %v551
      %v588 = vpack.c.b16 %v573, %v572
      %v589 = vpack.c.b16 %v575, %v574
      %v590 = vpack.c.b16 %v577, %v576
      %v591 = vpack.c.b16 %v579, %v578
      %v592 = vpack.c.b16 %v581, %v580
      %v593 = vpack.c.b16 %v583, %v582
      %v594 = vpack.c.b16 %v585, %v584
      %v595 = vpack.c.b16 %v587, %v586
      %604 = vmatpush.bf16.msra.mxu0 %v595
      %605 = vmatpush.bf16.msra.mxu0 %v594
      %606 = vmatpush.bf16.msra.mxu0 %v593
      %607 = vmatpush.bf16.msra.mxu0 %v592
      %608 = vmatpush.bf16.msra.mxu0 %v591
      %609 = vmatpush.bf16.msra.mxu0 %v590
      %610 = vmatpush.bf16.msra.mxu0 %v589
      %611 = vmatpush.bf16.msra.mxu0 %v588
      %612 = vmatmul.bf16.gmra.mxu0 %v520
      %v613 = vpop.f32.mrf.mxu0
      %v614 = vadd.f32 %v554, %v613
      %v615 = vpop.f32.mrf.mxu0
      %v616 = vadd.f32 %v554, %v615
      %617 = vmatmul.bf16.gmra.mxu0 %v521
      %v618 = vpop.f32.mrf.mxu0
      %v619 = vadd.f32 %v554, %v618
      %v620 = vpop.f32.mrf.mxu0
      %v621 = vadd.f32 %v554, %v620
      %622 = vmatmul.bf16.gmra.mxu0 %v522
      %v623 = vpop.f32.mrf.mxu0
      %v624 = vadd.f32 %v554, %v623
      %v625 = vpop.f32.mrf.mxu0
      %v626 = vadd.f32 %v554, %v625
      %627 = vmatmul.bf16.gmra.mxu0 %v523
      %v628 = vpop.f32.mrf.mxu0
      %v629 = vadd.f32 %v554, %v628
      %v630 = vpop.f32.mrf.mxu0
      %v631 = vadd.f32 %v554, %v630
      %632 = vmatmul.bf16.gmra.mxu0 %v524
      %v633 = vpop.f32.mrf.mxu0
      %v634 = vadd.f32 %v554, %v633
      %v635 = vpop.f32.mrf.mxu0
      %v636 = vadd.f32 %v554, %v635
      %637 = vmatmul.bf16.gmra.mxu0 %v525
      %v638 = vpop.f32.mrf.mxu0
      %v639 = vadd.f32 %v554, %v638
      %v640 = vpop.f32.mrf.mxu0
      %v641 = vadd.f32 %v554, %v640
      %642 = vmatmul.bf16.gmra.mxu0 %v526
      %v643 = vpop.f32.mrf.mxu0
      %v644 = vadd.f32 %v554, %v643
      %v645 = vpop.f32.mrf.mxu0
      %v646 = vadd.f32 %v554, %v645
      %647 = vmatmul.bf16.gmra.mxu0 %v527
      %v648 = vpop.f32.mrf.mxu0
      %v649 = vadd.f32 %v554, %v648
      %v650 = vpop.f32.mrf.mxu0
      %v651 = vadd.f32 %v554, %v650
      %652 = vmatmul.bf16.gmra.mxu0 %v528
      %v653 = vpop.f32.mrf.mxu0
      %v654 = vadd.f32 %v554, %v653
      %v655 = vpop.f32.mrf.mxu0
      %v656 = vadd.f32 %v554, %v655
      %657 = vmatmul.bf16.gmra.mxu0 %v529
      %v658 = vpop.f32.mrf.mxu0
      %v659 = vadd.f32 %v554, %v658
      %v660 = vpop.f32.mrf.mxu0
      %v661 = vadd.f32 %v554, %v660
      %662 = vmatmul.bf16.gmra.mxu0 %v530
      %v663 = vpop.f32.mrf.mxu0
      %v664 = vadd.f32 %v554, %v663
      %v665 = vpop.f32.mrf.mxu0
      %v666 = vadd.f32 %v554, %v665
      %667 = vmatmul.bf16.gmra.mxu0 %v531
      %v668 = vpop.f32.mrf.mxu0
      %v669 = vadd.f32 %v554, %v668
      %v670 = vpop.f32.mrf.mxu0
      %v671 = vadd.f32 %v554, %v670
      %672 = vmatmul.bf16.gmra.mxu0 %v532
      %v673 = vpop.f32.mrf.mxu0
      %v674 = vadd.f32 %v554, %v673
      %v675 = vpop.f32.mrf.mxu0
      %v676 = vadd.f32 %v554, %v675
      %677 = vmatmul.bf16.gmra.mxu0 %v533
      %v678 = vpop.f32.mrf.mxu0
      %v679 = vadd.f32 %v554, %v678
      %v680 = vpop.f32.mrf.mxu0
      %v681 = vadd.f32 %v554, %v680
      %682 = vmatmul.bf16.gmra.mxu0 %v534
      %v683 = vpop.f32.mrf.mxu0
      %v684 = vadd.f32 %v554, %v683
      %v685 = vpop.f32.mrf.mxu0
      %v686 = vadd.f32 %v554, %v685
      %687 = vmatmul.bf16.gmra.mxu0 %v535
      %v688 = vpop.f32.mrf.mxu0
      %v689 = vadd.f32 %v554, %v688
      %v690 = vpop.f32.mrf.mxu0
      %v691 = vadd.f32 %v554, %v690
      %692 = vdwg.mxu0
      %vm693 = vcmask 334848
      %v694 = vsel %vm693, %v614, -inf
      %695 = vmax.xlane.f32.xlu0 %v694
      %v696 = vpop.xlane.xlu0 %695
      %v697 = vsel %vm693, %v616, -inf
      %698 = vmax.xlane.f32.xlu0 %v697
      %v699 = vpop.xlane.xlu0 %698
      %v700 = vsel %vm693, %v619, -inf
      %701 = vmax.xlane.f32.xlu0 %v700
      %v702 = vpop.xlane.xlu0 %701
      %v703 = vsel %vm693, %v621, -inf
      %704 = vmax.xlane.f32.xlu0 %v703
      %v705 = vpop.xlane.xlu0 %704
      %v706 = vsel %vm693, %v624, -inf
      %707 = vmax.xlane.f32.xlu0 %v706
      %v708 = vpop.xlane.xlu0 %707
      %v709 = vsel %vm693, %v626, -inf
      %710 = vmax.xlane.f32.xlu0 %v709
      %v711 = vpop.xlane.xlu0 %710
      %v712 = vsel %vm693, %v629, -inf
      %713 = vmax.xlane.f32.xlu0 %v712
      %v714 = vpop.xlane.xlu0 %713
      %v715 = vsel %vm693, %v631, -inf
      %716 = vmax.xlane.f32.xlu0 %v715
      %v717 = vpop.xlane.xlu0 %716
      %v718 = vsel %vm693, %v634, -inf
      %719 = vmax.xlane.f32.xlu0 %v718
      %v720 = vpop.xlane.xlu0 %719
      %v721 = vsel %vm693, %v636, -inf
      %722 = vmax.xlane.f32.xlu0 %v721
      %v723 = vpop.xlane.xlu0 %722
      %v724 = vsel %vm693, %v639, -inf
      %725 = vmax.xlane.f32.xlu0 %v724
      %v726 = vpop.xlane.xlu0 %725
      %v727 = vsel %vm693, %v641, -inf
      %728 = vmax.xlane.f32.xlu0 %v727
      %v729 = vpop.xlane.xlu0 %728
      %v730 = vsel %vm693, %v644, -inf
      %731 = vmax.xlane.f32.xlu0 %v730
      %v732 = vpop.xlane.xlu0 %731
      %v733 = vsel %vm693, %v646, -inf
      %734 = vmax.xlane.f32.xlu0 %v733
      %v735 = vpop.xlane.xlu0 %734
      %v736 = vsel %vm693, %v649, -inf
      %737 = vmax.xlane.f32.xlu0 %v736
      %v738 = vpop.xlane.xlu0 %737
      %v739 = vsel %vm693, %v651, -inf
      %740 = vmax.xlane.f32.xlu0 %v739
      %v741 = vpop.xlane.xlu0 %740
      %v742 = vsel %vm693, %v654, -inf
      %743 = vmax.xlane.f32.xlu0 %v742
      %v744 = vpop.xlane.xlu0 %743
      %v745 = vsel %vm693, %v656, -inf
      %746 = vmax.xlane.f32.xlu0 %v745
      %v747 = vpop.xlane.xlu0 %746
      %v748 = vsel %vm693, %v659, -inf
      %749 = vmax.xlane.f32.xlu0 %v748
      %v750 = vpop.xlane.xlu0 %749
      %v751 = vsel %vm693, %v661, -inf
      %752 = vmax.xlane.f32.xlu0 %v751
      %v753 = vpop.xlane.xlu0 %752
      %v754 = vsel %vm693, %v664, -inf
      %755 = vmax.xlane.f32.xlu0 %v754
      %v756 = vpop.xlane.xlu0 %755
      %v757 = vsel %vm693, %v666, -inf
      %758 = vmax.xlane.f32.xlu0 %v757
      %v759 = vpop.xlane.xlu0 %758
      %v760 = vsel %vm693, %v669, -inf
      %761 = vmax.xlane.f32.xlu0 %v760
      %v762 = vpop.xlane.xlu0 %761
      %v763 = vsel %vm693, %v671, -inf
      %764 = vmax.xlane.f32.xlu0 %v763
      %v765 = vpop.xlane.xlu0 %764
      %v766 = vsel %vm693, %v674, -inf
      %767 = vmax.xlane.f32.xlu0 %v766
      %v768 = vpop.xlane.xlu0 %767
      %v769 = vsel %vm693, %v676, -inf
      %770 = vmax.xlane.f32.xlu0 %v769
      %v771 = vpop.xlane.xlu0 %770
      %v772 = vsel %vm693, %v679, -inf
      %773 = vmax.xlane.f32.xlu0 %v772
      %v774 = vpop.xlane.xlu0 %773
      %v775 = vsel %vm693, %v681, -inf
      %776 = vmax.xlane.f32.xlu0 %v775
      %v777 = vpop.xlane.xlu0 %776
      %v778 = vsel %vm693, %v684, -inf
      %779 = vmax.xlane.f32.xlu0 %v778
      %v780 = vpop.xlane.xlu0 %779
      %v781 = vsel %vm693, %v686, -inf
      %782 = vmax.xlane.f32.xlu0 %v781
      %v783 = vpop.xlane.xlu0 %782
      %v784 = vsel %vm693, %v689, -inf
      %785 = vmax.xlane.f32.xlu0 %v784
      %v786 = vpop.xlane.xlu0 %785
      %v787 = vsel %vm693, %v691, -inf
      %788 = vmax.xlane.f32.xlu0 %v787
      %v789 = vpop.xlane.xlu0 %788
      %v790 = vsub.f32 %v614, %v696
      %v791 = vsub.f32 %v616, %v699
      %v792 = vsub.f32 %v619, %v702
      %v793 = vsub.f32 %v621, %v705
      %v794 = vsub.f32 %v624, %v708
      %v795 = vsub.f32 %v626, %v711
      %v796 = vsub.f32 %v629, %v714
      %v797 = vsub.f32 %v631, %v717
      %v798 = vsub.f32 %v634, %v720
      %v799 = vsub.f32 %v636, %v723
      %v800 = vsub.f32 %v639, %v726
      %v801 = vsub.f32 %v641, %v729
      %v802 = vsub.f32 %v644, %v732
      %v803 = vsub.f32 %v646, %v735
      %v804 = vsub.f32 %v649, %v738
      %v805 = vsub.f32 %v651, %v741
      %v806 = vsub.f32 %v654, %v744
      %v807 = vsub.f32 %v656, %v747
      %v808 = vsub.f32 %v659, %v750
      %v809 = vsub.f32 %v661, %v753
      %v810 = vsub.f32 %v664, %v756
      %v811 = vsub.f32 %v666, %v759
      %v812 = vsub.f32 %v669, %v762
      %v813 = vsub.f32 %v671, %v765
      %v814 = vsub.f32 %v674, %v768
      %v815 = vsub.f32 %v676, %v771
      %v816 = vsub.f32 %v679, %v774
      %v817 = vsub.f32 %v681, %v777
      %v818 = vsub.f32 %v684, %v780
      %v819 = vsub.f32 %v686, %v783
      %v820 = vsub.f32 %v689, %v786
      %v821 = vsub.f32 %v691, %v789
      %v822 = vmul.f32 %v790, 1.442695
      %v823 = vpow.pop %v822
      %v824 = vmul.f32 %v791, 1.442695
      %v825 = vpow.pop %v824
      %v826 = vmul.f32 %v792, 1.442695
      %v827 = vpow.pop %v826
      %v828 = vmul.f32 %v793, 1.442695
      %v829 = vpow.pop %v828
      %v830 = vmul.f32 %v794, 1.442695
      %v831 = vpow.pop %v830
      %v832 = vmul.f32 %v795, 1.442695
      %v833 = vpow.pop %v832
      %v834 = vmul.f32 %v796, 1.442695
      %v835 = vpow.pop %v834
      %v836 = vmul.f32 %v797, 1.442695
      %v837 = vpow.pop %v836
      %v838 = vmul.f32 %v798, 1.442695
      %v839 = vpow.pop %v838
      %v840 = vmul.f32 %v799, 1.442695
      %v841 = vpow.pop %v840
      %v842 = vmul.f32 %v800, 1.442695
      %v843 = vpow.pop %v842
      %v844 = vmul.f32 %v801, 1.442695
      %v845 = vpow.pop %v844
      %v846 = vmul.f32 %v802, 1.442695
      %v847 = vpow.pop %v846
      %v848 = vmul.f32 %v803, 1.442695
      %v849 = vpow.pop %v848
      %v850 = vmul.f32 %v804, 1.442695
      %v851 = vpow.pop %v850
      %v852 = vmul.f32 %v805, 1.442695
      %v853 = vpow.pop %v852
      %v854 = vmul.f32 %v806, 1.442695
      %v855 = vpow.pop %v854
      %v856 = vmul.f32 %v807, 1.442695
      %v857 = vpow.pop %v856
      %v858 = vmul.f32 %v808, 1.442695
      %v859 = vpow.pop %v858
      %v860 = vmul.f32 %v809, 1.442695
      %v861 = vpow.pop %v860
      %v862 = vmul.f32 %v810, 1.442695
      %v863 = vpow.pop %v862
      %v864 = vmul.f32 %v811, 1.442695
      %v865 = vpow.pop %v864
      %v866 = vmul.f32 %v812, 1.442695
      %v867 = vpow.pop %v866
      %v868 = vmul.f32 %v813, 1.442695
      %v869 = vpow.pop %v868
      %v870 = vmul.f32 %v814, 1.442695
      %v871 = vpow.pop %v870
      %v872 = vmul.f32 %v815, 1.442695
      %v873 = vpow.pop %v872
      %v874 = vmul.f32 %v816, 1.442695
      %v875 = vpow.pop %v874
      %v876 = vmul.f32 %v817, 1.442695
      %v877 = vpow.pop %v876
      %v878 = vmul.f32 %v818, 1.442695
      %v879 = vpow.pop %v878
      %v880 = vmul.f32 %v819, 1.442695
      %v881 = vpow.pop %v880
      %v882 = vmul.f32 %v820, 1.442695
      %v883 = vpow.pop %v882
      %v884 = vmul.f32 %v821, 1.442695
      %v885 = vpow.pop %v884
      %v886 = vsel %vm693, %v823, 0.0
      %887 = vadd.xlane.f32.xlu0 %v886
      %v888 = vpop.xlane.xlu0 %887
      %v889 = vsel %vm693, %v825, 0.0
      %890 = vadd.xlane.f32.xlu0 %v889
      %v891 = vpop.xlane.xlu0 %890
      %v892 = vsel %vm693, %v827, 0.0
      %893 = vadd.xlane.f32.xlu0 %v892
      %v894 = vpop.xlane.xlu0 %893
      %v895 = vsel %vm693, %v829, 0.0
      %896 = vadd.xlane.f32.xlu0 %v895
      %v897 = vpop.xlane.xlu0 %896
      %v898 = vsel %vm693, %v831, 0.0
      %899 = vadd.xlane.f32.xlu0 %v898
      %v900 = vpop.xlane.xlu0 %899
      %v901 = vsel %vm693, %v833, 0.0
      %902 = vadd.xlane.f32.xlu0 %v901
      %v903 = vpop.xlane.xlu0 %902
      %v904 = vsel %vm693, %v835, 0.0
      %905 = vadd.xlane.f32.xlu0 %v904
      %v906 = vpop.xlane.xlu0 %905
      %v907 = vsel %vm693, %v837, 0.0
      %908 = vadd.xlane.f32.xlu0 %v907
      %v909 = vpop.xlane.xlu0 %908
      %v910 = vsel %vm693, %v839, 0.0
      %911 = vadd.xlane.f32.xlu0 %v910
      %v912 = vpop.xlane.xlu0 %911
      %v913 = vsel %vm693, %v841, 0.0
      %914 = vadd.xlane.f32.xlu0 %v913
      %v915 = vpop.xlane.xlu0 %914
      %v916 = vsel %vm693, %v843, 0.0
      %917 = vadd.xlane.f32.xlu0 %v916
      %v918 = vpop.xlane.xlu0 %917
      %v919 = vsel %vm693, %v845, 0.0
      %920 = vadd.xlane.f32.xlu0 %v919
      %v921 = vpop.xlane.xlu0 %920
      %v922 = vsel %vm693, %v847, 0.0
      %923 = vadd.xlane.f32.xlu0 %v922
      %v924 = vpop.xlane.xlu0 %923
      %v925 = vsel %vm693, %v849, 0.0
      %926 = vadd.xlane.f32.xlu0 %v925
      %v927 = vpop.xlane.xlu0 %926
      %v928 = vsel %vm693, %v851, 0.0
      %929 = vadd.xlane.f32.xlu0 %v928
      %v930 = vpop.xlane.xlu0 %929
      %v931 = vsel %vm693, %v853, 0.0
      %932 = vadd.xlane.f32.xlu0 %v931
      %v933 = vpop.xlane.xlu0 %932
      %v934 = vsel %vm693, %v855, 0.0
      %935 = vadd.xlane.f32.xlu0 %v934
      %v936 = vpop.xlane.xlu0 %935
      %v937 = vsel %vm693, %v857, 0.0
      %938 = vadd.xlane.f32.xlu0 %v937
      %v939 = vpop.xlane.xlu0 %938
      %v940 = vsel %vm693, %v859, 0.0
      %941 = vadd.xlane.f32.xlu0 %v940
      %v942 = vpop.xlane.xlu0 %941
      %v943 = vsel %vm693, %v861, 0.0
      %944 = vadd.xlane.f32.xlu0 %v943
      %v945 = vpop.xlane.xlu0 %944
      %v946 = vsel %vm693, %v863, 0.0
      %947 = vadd.xlane.f32.xlu0 %v946
      %v948 = vpop.xlane.xlu0 %947
      %v949 = vsel %vm693, %v865, 0.0
      %950 = vadd.xlane.f32.xlu0 %v949
      %v951 = vpop.xlane.xlu0 %950
      %v952 = vsel %vm693, %v867, 0.0
      %953 = vadd.xlane.f32.xlu0 %v952
      %v954 = vpop.xlane.xlu0 %953
      %v955 = vsel %vm693, %v869, 0.0
      %956 = vadd.xlane.f32.xlu0 %v955
      %v957 = vpop.xlane.xlu0 %956
      %v958 = vsel %vm693, %v871, 0.0
      %959 = vadd.xlane.f32.xlu0 %v958
      %v960 = vpop.xlane.xlu0 %959
      %v961 = vsel %vm693, %v873, 0.0
      %962 = vadd.xlane.f32.xlu0 %v961
      %v963 = vpop.xlane.xlu0 %962
      %v964 = vsel %vm693, %v875, 0.0
      %965 = vadd.xlane.f32.xlu0 %v964
      %v966 = vpop.xlane.xlu0 %965
      %v967 = vsel %vm693, %v877, 0.0
      %968 = vadd.xlane.f32.xlu0 %v967
      %v969 = vpop.xlane.xlu0 %968
      %v970 = vsel %vm693, %v879, 0.0
      %971 = vadd.xlane.f32.xlu0 %v970
      %v972 = vpop.xlane.xlu0 %971
      %v973 = vsel %vm693, %v881, 0.0
      %974 = vadd.xlane.f32.xlu0 %v973
      %v975 = vpop.xlane.xlu0 %974
      %v976 = vsel %vm693, %v883, 0.0
      %977 = vadd.xlane.f32.xlu0 %v976
      %v978 = vpop.xlane.xlu0 %977
      %v979 = vsel %vm693, %v885, 0.0
      %980 = vadd.xlane.f32.xlu0 %v979
      %v981 = vpop.xlane.xlu0 %980
      %v982 = vrcp.pop %v888
      %v983 = vmul.f32 %v888, %v982
      %v984 = vsub.f32 1.0, %v983
      %v985 = vmul.f32 %v982, %v984
      %v986 = vadd.f32 %v982, %v985
      %vm987 = vweird.f32 %v888
      %vm988 = vweird.f32 %v982
      %vm989 = vmor %vm987, %vm988
      %v990 = vsel %vm989, %v982, %v986
      %v991 = vand.u32 2147483647, %v888
      %vm992 = vcmp.eq.f32.partialorder %v991, 8.507059e+37
      %v993 = vand.u32 %v888, 2147483648
      %v994 = vor.u32 1.1754944e-38, %v993
      %v995 = vsel %vm992, %v994, %v990
      %v996 = vmul.f32 %v823, %v995
      %v997 = vrcp.pop %v891
      %v998 = vmul.f32 %v891, %v997
      %v999 = vsub.f32 1.0, %v998
      %v1000 = vmul.f32 %v997, %v999
      %v1001 = vadd.f32 %v997, %v1000
      %vm1002 = vweird.f32 %v891
      %vm1003 = vweird.f32 %v997
      %vm1004 = vmor %vm1002, %vm1003
      %v1005 = vsel %vm1004, %v997, %v1001
      %v1006 = vand.u32 2147483647, %v891
      %vm1007 = vcmp.eq.f32.partialorder %v1006, 8.507059e+37
      %v1008 = vand.u32 %v891, 2147483648
      %v1009 = vor.u32 1.1754944e-38, %v1008
      %v1010 = vsel %vm1007, %v1009, %v1005
      %v1011 = vmul.f32 %v825, %v1010
      %v1012 = vrcp.pop %v894
      %v1013 = vmul.f32 %v894, %v1012
      %v1014 = vsub.f32 1.0, %v1013
      %v1015 = vmul.f32 %v1012, %v1014
      %v1016 = vadd.f32 %v1012, %v1015
      %vm1017 = vweird.f32 %v894
      %vm1018 = vweird.f32 %v1012
      %vm1019 = vmor %vm1017, %vm1018
      %v1020 = vsel %vm1019, %v1012, %v1016
      %v1021 = vand.u32 2147483647, %v894
      %vm1022 = vcmp.eq.f32.partialorder %v1021, 8.507059e+37
      %v1023 = vand.u32 %v894, 2147483648
      %v1024 = vor.u32 1.1754944e-38, %v1023
      %v1025 = vsel %vm1022, %v1024, %v1020
      %v1026 = vmul.f32 %v827, %v1025
      %v1027 = vrcp.pop %v897
      %v1028 = vmul.f32 %v897, %v1027
      %v1029 = vsub.f32 1.0, %v1028
      %v1030 = vmul.f32 %v1027, %v1029
      %v1031 = vadd.f32 %v1027, %v1030
      %vm1032 = vweird.f32 %v897
      %vm1033 = vweird.f32 %v1027
      %vm1034 = vmor %vm1032, %vm1033
      %v1035 = vsel %vm1034, %v1027, %v1031
      %v1036 = vand.u32 2147483647, %v897
      %vm1037 = vcmp.eq.f32.partialorder %v1036, 8.507059e+37
      %v1038 = vand.u32 %v897, 2147483648
      %v1039 = vor.u32 1.1754944e-38, %v1038
      %v1040 = vsel %vm1037, %v1039, %v1035
      %v1041 = vmul.f32 %v829, %v1040
      %v1042 = vrcp.pop %v900
      %v1043 = vmul.f32 %v900, %v1042
      %v1044 = vsub.f32 1.0, %v1043
      %v1045 = vmul.f32 %v1042, %v1044
      %v1046 = vadd.f32 %v1042, %v1045
      %vm1047 = vweird.f32 %v900
      %vm1048 = vweird.f32 %v1042
      %vm1049 = vmor %vm1047, %vm1048
      %v1050 = vsel %vm1049, %v1042, %v1046
      %v1051 = vand.u32 2147483647, %v900
      %vm1052 = vcmp.eq.f32.partialorder %v1051, 8.507059e+37
      %v1053 = vand.u32 %v900, 2147483648
      %v1054 = vor.u32 1.1754944e-38, %v1053
      %v1055 = vsel %vm1052, %v1054, %v1050
      %v1056 = vmul.f32 %v831, %v1055
      %v1057 = vrcp.pop %v903
      %v1058 = vmul.f32 %v903, %v1057
      %v1059 = vsub.f32 1.0, %v1058
      %v1060 = vmul.f32 %v1057, %v1059
      %v1061 = vadd.f32 %v1057, %v1060
      %vm1062 = vweird.f32 %v903
      %vm1063 = vweird.f32 %v1057
      %vm1064 = vmor %vm1062, %vm1063
      %v1065 = vsel %vm1064, %v1057, %v1061
      %v1066 = vand.u32 2147483647, %v903
      %vm1067 = vcmp.eq.f32.partialorder %v1066, 8.507059e+37
      %v1068 = vand.u32 %v903, 2147483648
      %v1069 = vor.u32 1.1754944e-38, %v1068
      %v1070 = vsel %vm1067, %v1069, %v1065
      %v1071 = vmul.f32 %v833, %v1070
      %v1072 = vrcp.pop %v906
      %v1073 = vmul.f32 %v906, %v1072
      %v1074 = vsub.f32 1.0, %v1073
      %v1075 = vmul.f32 %v1072, %v1074
      %v1076 = vadd.f32 %v1072, %v1075
      %vm1077 = vweird.f32 %v906
      %vm1078 = vweird.f32 %v1072
      %vm1079 = vmor %vm1077, %vm1078
      %v1080 = vsel %vm1079, %v1072, %v1076
      %v1081 = vand.u32 2147483647, %v906
      %vm1082 = vcmp.eq.f32.partialorder %v1081, 8.507059e+37
      %v1083 = vand.u32 %v906, 2147483648
      %v1084 = vor.u32 1.1754944e-38, %v1083
      %v1085 = vsel %vm1082, %v1084, %v1080
      %v1086 = vmul.f32 %v835, %v1085
      %v1087 = vrcp.pop %v909
      %v1088 = vmul.f32 %v909, %v1087
      %v1089 = vsub.f32 1.0, %v1088
      %v1090 = vmul.f32 %v1087, %v1089
      %v1091 = vadd.f32 %v1087, %v1090
      %vm1092 = vweird.f32 %v909
      %vm1093 = vweird.f32 %v1087
      %vm1094 = vmor %vm1092, %vm1093
      %v1095 = vsel %vm1094, %v1087, %v1091
      %v1096 = vand.u32 2147483647, %v909
      %vm1097 = vcmp.eq.f32.partialorder %v1096, 8.507059e+37
      %v1098 = vand.u32 %v909, 2147483648
      %v1099 = vor.u32 1.1754944e-38, %v1098
      %v1100 = vsel %vm1097, %v1099, %v1095
      %v1101 = vmul.f32 %v837, %v1100
      %v1102 = vrcp.pop %v912
      %v1103 = vmul.f32 %v912, %v1102
      %v1104 = vsub.f32 1.0, %v1103
      %v1105 = vmul.f32 %v1102, %v1104
      %v1106 = vadd.f32 %v1102, %v1105
      %vm1107 = vweird.f32 %v912
      %vm1108 = vweird.f32 %v1102
      %vm1109 = vmor %vm1107, %vm1108
      %v1110 = vsel %vm1109, %v1102, %v1106
      %v1111 = vand.u32 2147483647, %v912
      %vm1112 = vcmp.eq.f32.partialorder %v1111, 8.507059e+37
      %v1113 = vand.u32 %v912, 2147483648
      %v1114 = vor.u32 1.1754944e-38, %v1113
      %v1115 = vsel %vm1112, %v1114, %v1110
      %v1116 = vmul.f32 %v839, %v1115
      %v1117 = vrcp.pop %v915
      %v1118 = vmul.f32 %v915, %v1117
      %v1119 = vsub.f32 1.0, %v1118
      %v1120 = vmul.f32 %v1117, %v1119
      %v1121 = vadd.f32 %v1117, %v1120
      %vm1122 = vweird.f32 %v915
      %vm1123 = vweird.f32 %v1117
      %vm1124 = vmor %vm1122, %vm1123
      %v1125 = vsel %vm1124, %v1117, %v1121
      %v1126 = vand.u32 2147483647, %v915
      %vm1127 = vcmp.eq.f32.partialorder %v1126, 8.507059e+37
      %v1128 = vand.u32 %v915, 2147483648
      %v1129 = vor.u32 1.1754944e-38, %v1128
      %v1130 = vsel %vm1127, %v1129, %v1125
      %v1131 = vmul.f32 %v841, %v1130
      %v1132 = vrcp.pop %v918
      %v1133 = vmul.f32 %v918, %v1132
      %v1134 = vsub.f32 1.0, %v1133
      %v1135 = vmul.f32 %v1132, %v1134
      %v1136 = vadd.f32 %v1132, %v1135
      %vm1137 = vweird.f32 %v918
      %vm1138 = vweird.f32 %v1132
      %vm1139 = vmor %vm1137, %vm1138
      %v1140 = vsel %vm1139, %v1132, %v1136
      %v1141 = vand.u32 2147483647, %v918
      %vm1142 = vcmp.eq.f32.partialorder %v1141, 8.507059e+37
      %v1143 = vand.u32 %v918, 2147483648
      %v1144 = vor.u32 1.1754944e-38, %v1143
      %v1145 = vsel %vm1142, %v1144, %v1140
      %v1146 = vmul.f32 %v843, %v1145
      %v1147 = vrcp.pop %v921
      %v1148 = vmul.f32 %v921, %v1147
      %v1149 = vsub.f32 1.0, %v1148
      %v1150 = vmul.f32 %v1147, %v1149
      %v1151 = vadd.f32 %v1147, %v1150
      %vm1152 = vweird.f32 %v921
      %vm1153 = vweird.f32 %v1147
      %vm1154 = vmor %vm1152, %vm1153
      %v1155 = vsel %vm1154, %v1147, %v1151
      %v1156 = vand.u32 2147483647, %v921
      %vm1157 = vcmp.eq.f32.partialorder %v1156, 8.507059e+37
      %v1158 = vand.u32 %v921, 2147483648
      %v1159 = vor.u32 1.1754944e-38, %v1158
      %v1160 = vsel %vm1157, %v1159, %v1155
      %v1161 = vmul.f32 %v845, %v1160
      %v1162 = vrcp.pop %v924
      %v1163 = vmul.f32 %v924, %v1162
      %v1164 = vsub.f32 1.0, %v1163
      %v1165 = vmul.f32 %v1162, %v1164
      %v1166 = vadd.f32 %v1162, %v1165
      %vm1167 = vweird.f32 %v924
      %vm1168 = vweird.f32 %v1162
      %vm1169 = vmor %vm1167, %vm1168
      %v1170 = vsel %vm1169, %v1162, %v1166
      %v1171 = vand.u32 2147483647, %v924
      %vm1172 = vcmp.eq.f32.partialorder %v1171, 8.507059e+37
      %v1173 = vand.u32 %v924, 2147483648
      %v1174 = vor.u32 1.1754944e-38, %v1173
      %v1175 = vsel %vm1172, %v1174, %v1170
      %v1176 = vmul.f32 %v847, %v1175
      %v1177 = vrcp.pop %v927
      %v1178 = vmul.f32 %v927, %v1177
      %v1179 = vsub.f32 1.0, %v1178
      %v1180 = vmul.f32 %v1177, %v1179
      %v1181 = vadd.f32 %v1177, %v1180
      %vm1182 = vweird.f32 %v927
      %vm1183 = vweird.f32 %v1177
      %vm1184 = vmor %vm1182, %vm1183
      %v1185 = vsel %vm1184, %v1177, %v1181
      %v1186 = vand.u32 2147483647, %v927
      %vm1187 = vcmp.eq.f32.partialorder %v1186, 8.507059e+37
      %v1188 = vand.u32 %v927, 2147483648
      %v1189 = vor.u32 1.1754944e-38, %v1188
      %v1190 = vsel %vm1187, %v1189, %v1185
      %v1191 = vmul.f32 %v849, %v1190
      %v1192 = vrcp.pop %v930
      %v1193 = vmul.f32 %v930, %v1192
      %v1194 = vsub.f32 1.0, %v1193
      %v1195 = vmul.f32 %v1192, %v1194
      %v1196 = vadd.f32 %v1192, %v1195
      %vm1197 = vweird.f32 %v930
      %vm1198 = vweird.f32 %v1192
      %vm1199 = vmor %vm1197, %vm1198
      %v1200 = vsel %vm1199, %v1192, %v1196
      %v1201 = vand.u32 2147483647, %v930
      %vm1202 = vcmp.eq.f32.partialorder %v1201, 8.507059e+37
      %v1203 = vand.u32 %v930, 2147483648
      %v1204 = vor.u32 1.1754944e-38, %v1203
      %v1205 = vsel %vm1202, %v1204, %v1200
      %v1206 = vmul.f32 %v851, %v1205
      %v1207 = vrcp.pop %v933
      %v1208 = vmul.f32 %v933, %v1207
      %v1209 = vsub.f32 1.0, %v1208
      %v1210 = vmul.f32 %v1207, %v1209
      %v1211 = vadd.f32 %v1207, %v1210
      %vm1212 = vweird.f32 %v933
      %vm1213 = vweird.f32 %v1207
      %vm1214 = vmor %vm1212, %vm1213
      %v1215 = vsel %vm1214, %v1207, %v1211
      %v1216 = vand.u32 2147483647, %v933
      %vm1217 = vcmp.eq.f32.partialorder %v1216, 8.507059e+37
      %v1218 = vand.u32 %v933, 2147483648
      %v1219 = vor.u32 1.1754944e-38, %v1218
      %v1220 = vsel %vm1217, %v1219, %v1215
      %v1221 = vmul.f32 %v853, %v1220
      %v1222 = vrcp.pop %v936
      %v1223 = vmul.f32 %v936, %v1222
      %v1224 = vsub.f32 1.0, %v1223
      %v1225 = vmul.f32 %v1222, %v1224
      %v1226 = vadd.f32 %v1222, %v1225
      %vm1227 = vweird.f32 %v936
      %vm1228 = vweird.f32 %v1222
      %vm1229 = vmor %vm1227, %vm1228
      %v1230 = vsel %vm1229, %v1222, %v1226
      %v1231 = vand.u32 2147483647, %v936
      %vm1232 = vcmp.eq.f32.partialorder %v1231, 8.507059e+37
      %v1233 = vand.u32 %v936, 2147483648
      %v1234 = vor.u32 1.1754944e-38, %v1233
      %v1235 = vsel %vm1232, %v1234, %v1230
      %v1236 = vmul.f32 %v855, %v1235
      %v1237 = vrcp.pop %v939
      %v1238 = vmul.f32 %v939, %v1237
      %v1239 = vsub.f32 1.0, %v1238
      %v1240 = vmul.f32 %v1237, %v1239
      %v1241 = vadd.f32 %v1237, %v1240
      %vm1242 = vweird.f32 %v939
      %vm1243 = vweird.f32 %v1237
      %vm1244 = vmor %vm1242, %vm1243
      %v1245 = vsel %vm1244, %v1237, %v1241
      %v1246 = vand.u32 2147483647, %v939
      %vm1247 = vcmp.eq.f32.partialorder %v1246, 8.507059e+37
      %v1248 = vand.u32 %v939, 2147483648
      %v1249 = vor.u32 1.1754944e-38, %v1248
      %v1250 = vsel %vm1247, %v1249, %v1245
      %v1251 = vmul.f32 %v857, %v1250
      %v1252 = vrcp.pop %v942
      %v1253 = vmul.f32 %v942, %v1252
      %v1254 = vsub.f32 1.0, %v1253
      %v1255 = vmul.f32 %v1252, %v1254
      %v1256 = vadd.f32 %v1252, %v1255
      %vm1257 = vweird.f32 %v942
      %vm1258 = vweird.f32 %v1252
      %vm1259 = vmor %vm1257, %vm1258
      %v1260 = vsel %vm1259, %v1252, %v1256
      %v1261 = vand.u32 2147483647, %v942
      %vm1262 = vcmp.eq.f32.partialorder %v1261, 8.507059e+37
      %v1263 = vand.u32 %v942, 2147483648
      %v1264 = vor.u32 1.1754944e-38, %v1263
      %v1265 = vsel %vm1262, %v1264, %v1260
      %v1266 = vmul.f32 %v859, %v1265
      %v1267 = vrcp.pop %v945
      %v1268 = vmul.f32 %v945, %v1267
      %v1269 = vsub.f32 1.0, %v1268
      %v1270 = vmul.f32 %v1267, %v1269
      %v1271 = vadd.f32 %v1267, %v1270
      %vm1272 = vweird.f32 %v945
      %vm1273 = vweird.f32 %v1267
      %vm1274 = vmor %vm1272, %vm1273
      %v1275 = vsel %vm1274, %v1267, %v1271
      %v1276 = vand.u32 2147483647, %v945
      %vm1277 = vcmp.eq.f32.partialorder %v1276, 8.507059e+37
      %v1278 = vand.u32 %v945, 2147483648
      %v1279 = vor.u32 1.1754944e-38, %v1278
      %v1280 = vsel %vm1277, %v1279, %v1275
      %v1281 = vmul.f32 %v861, %v1280
      %v1282 = vrcp.pop %v948
      %v1283 = vmul.f32 %v948, %v1282
      %v1284 = vsub.f32 1.0, %v1283
      %v1285 = vmul.f32 %v1282, %v1284
      %v1286 = vadd.f32 %v1282, %v1285
      %vm1287 = vweird.f32 %v948
      %vm1288 = vweird.f32 %v1282
      %vm1289 = vmor %vm1287, %vm1288
      %v1290 = vsel %vm1289, %v1282, %v1286
      %v1291 = vand.u32 2147483647, %v948
      %vm1292 = vcmp.eq.f32.partialorder %v1291, 8.507059e+37
      %v1293 = vand.u32 %v948, 2147483648
      %v1294 = vor.u32 1.1754944e-38, %v1293
      %v1295 = vsel %vm1292, %v1294, %v1290
      %v1296 = vmul.f32 %v863, %v1295
      %v1297 = vrcp.pop %v951
      %v1298 = vmul.f32 %v951, %v1297
      %v1299 = vsub.f32 1.0, %v1298
      %v1300 = vmul.f32 %v1297, %v1299
      %v1301 = vadd.f32 %v1297, %v1300
      %vm1302 = vweird.f32 %v951
      %vm1303 = vweird.f32 %v1297
      %vm1304 = vmor %vm1302, %vm1303
      %v1305 = vsel %vm1304, %v1297, %v1301
      %v1306 = vand.u32 2147483647, %v951
      %vm1307 = vcmp.eq.f32.partialorder %v1306, 8.507059e+37
      %v1308 = vand.u32 %v951, 2147483648
      %v1309 = vor.u32 1.1754944e-38, %v1308
      %v1310 = vsel %vm1307, %v1309, %v1305
      %v1311 = vmul.f32 %v865, %v1310
      %v1312 = vrcp.pop %v954
      %v1313 = vmul.f32 %v954, %v1312
      %v1314 = vsub.f32 1.0, %v1313
      %v1315 = vmul.f32 %v1312, %v1314
      %v1316 = vadd.f32 %v1312, %v1315
      %vm1317 = vweird.f32 %v954
      %vm1318 = vweird.f32 %v1312
      %vm1319 = vmor %vm1317, %vm1318
      %v1320 = vsel %vm1319, %v1312, %v1316
      %v1321 = vand.u32 2147483647, %v954
      %vm1322 = vcmp.eq.f32.partialorder %v1321, 8.507059e+37
      %v1323 = vand.u32 %v954, 2147483648
      %v1324 = vor.u32 1.1754944e-38, %v1323
      %v1325 = vsel %vm1322, %v1324, %v1320
      %v1326 = vmul.f32 %v867, %v1325
      %v1327 = vrcp.pop %v957
      %v1328 = vmul.f32 %v957, %v1327
      %v1329 = vsub.f32 1.0, %v1328
      %v1330 = vmul.f32 %v1327, %v1329
      %v1331 = vadd.f32 %v1327, %v1330
      %vm1332 = vweird.f32 %v957
      %vm1333 = vweird.f32 %v1327
      %vm1334 = vmor %vm1332, %vm1333
      %v1335 = vsel %vm1334, %v1327, %v1331
      %v1336 = vand.u32 2147483647, %v957
      %vm1337 = vcmp.eq.f32.partialorder %v1336, 8.507059e+37
      %v1338 = vand.u32 %v957, 2147483648
      %v1339 = vor.u32 1.1754944e-38, %v1338
      %v1340 = vsel %vm1337, %v1339, %v1335
      %v1341 = vmul.f32 %v869, %v1340
      %v1342 = vrcp.pop %v960
      %v1343 = vmul.f32 %v960, %v1342
      %v1344 = vsub.f32 1.0, %v1343
      %v1345 = vmul.f32 %v1342, %v1344
      %v1346 = vadd.f32 %v1342, %v1345
      %vm1347 = vweird.f32 %v960
      %vm1348 = vweird.f32 %v1342
      %vm1349 = vmor %vm1347, %vm1348
      %v1350 = vsel %vm1349, %v1342, %v1346
      %v1351 = vand.u32 2147483647, %v960
      %vm1352 = vcmp.eq.f32.partialorder %v1351, 8.507059e+37
      %v1353 = vand.u32 %v960, 2147483648
      %v1354 = vor.u32 1.1754944e-38, %v1353
      %v1355 = vsel %vm1352, %v1354, %v1350
      %v1356 = vmul.f32 %v871, %v1355
      %v1357 = vrcp.pop %v963
      %v1358 = vmul.f32 %v963, %v1357
      %v1359 = vsub.f32 1.0, %v1358
      %v1360 = vmul.f32 %v1357, %v1359
      %v1361 = vadd.f32 %v1357, %v1360
      %vm1362 = vweird.f32 %v963
      %vm1363 = vweird.f32 %v1357
      %vm1364 = vmor %vm1362, %vm1363
      %v1365 = vsel %vm1364, %v1357, %v1361
      %v1366 = vand.u32 2147483647, %v963
      %vm1367 = vcmp.eq.f32.partialorder %v1366, 8.507059e+37
      %v1368 = vand.u32 %v963, 2147483648
      %v1369 = vor.u32 1.1754944e-38, %v1368
      %v1370 = vsel %vm1367, %v1369, %v1365
      %v1371 = vmul.f32 %v873, %v1370
      %v1372 = vrcp.pop %v966
      %v1373 = vmul.f32 %v966, %v1372
      %v1374 = vsub.f32 1.0, %v1373
      %v1375 = vmul.f32 %v1372, %v1374
      %v1376 = vadd.f32 %v1372, %v1375
      %vm1377 = vweird.f32 %v966
      %vm1378 = vweird.f32 %v1372
      %vm1379 = vmor %vm1377, %vm1378
      %v1380 = vsel %vm1379, %v1372, %v1376
      %v1381 = vand.u32 2147483647, %v966
      %vm1382 = vcmp.eq.f32.partialorder %v1381, 8.507059e+37
      %v1383 = vand.u32 %v966, 2147483648
      %v1384 = vor.u32 1.1754944e-38, %v1383
      %v1385 = vsel %vm1382, %v1384, %v1380
      %v1386 = vmul.f32 %v875, %v1385
      %v1387 = vrcp.pop %v969
      %v1388 = vmul.f32 %v969, %v1387
      %v1389 = vsub.f32 1.0, %v1388
      %v1390 = vmul.f32 %v1387, %v1389
      %v1391 = vadd.f32 %v1387, %v1390
      %vm1392 = vweird.f32 %v969
      %vm1393 = vweird.f32 %v1387
      %vm1394 = vmor %vm1392, %vm1393
      %v1395 = vsel %vm1394, %v1387, %v1391
      %v1396 = vand.u32 2147483647, %v969
      %vm1397 = vcmp.eq.f32.partialorder %v1396, 8.507059e+37
      %v1398 = vand.u32 %v969, 2147483648
      %v1399 = vor.u32 1.1754944e-38, %v1398
      %v1400 = vsel %vm1397, %v1399, %v1395
      %v1401 = vmul.f32 %v877, %v1400
      %v1402 = vrcp.pop %v972
      %v1403 = vmul.f32 %v972, %v1402
      %v1404 = vsub.f32 1.0, %v1403
      %v1405 = vmul.f32 %v1402, %v1404
      %v1406 = vadd.f32 %v1402, %v1405
      %vm1407 = vweird.f32 %v972
      %vm1408 = vweird.f32 %v1402
      %vm1409 = vmor %vm1407, %vm1408
      %v1410 = vsel %vm1409, %v1402, %v1406
      %v1411 = vand.u32 2147483647, %v972
      %vm1412 = vcmp.eq.f32.partialorder %v1411, 8.507059e+37
      %v1413 = vand.u32 %v972, 2147483648
      %v1414 = vor.u32 1.1754944e-38, %v1413
      %v1415 = vsel %vm1412, %v1414, %v1410
      %v1416 = vmul.f32 %v879, %v1415
      %v1417 = vrcp.pop %v975
      %v1418 = vmul.f32 %v975, %v1417
      %v1419 = vsub.f32 1.0, %v1418
      %v1420 = vmul.f32 %v1417, %v1419
      %v1421 = vadd.f32 %v1417, %v1420
      %vm1422 = vweird.f32 %v975
      %vm1423 = vweird.f32 %v1417
      %vm1424 = vmor %vm1422, %vm1423
      %v1425 = vsel %vm1424, %v1417, %v1421
      %v1426 = vand.u32 2147483647, %v975
      %vm1427 = vcmp.eq.f32.partialorder %v1426, 8.507059e+37
      %v1428 = vand.u32 %v975, 2147483648
      %v1429 = vor.u32 1.1754944e-38, %v1428
      %v1430 = vsel %vm1427, %v1429, %v1425
      %v1431 = vmul.f32 %v881, %v1430
      %v1432 = vrcp.pop %v978
      %v1433 = vmul.f32 %v978, %v1432
      %v1434 = vsub.f32 1.0, %v1433
      %v1435 = vmul.f32 %v1432, %v1434
      %v1436 = vadd.f32 %v1432, %v1435
      %vm1437 = vweird.f32 %v978
      %vm1438 = vweird.f32 %v1432
      %vm1439 = vmor %vm1437, %vm1438
      %v1440 = vsel %vm1439, %v1432, %v1436
      %v1441 = vand.u32 2147483647, %v978
      %vm1442 = vcmp.eq.f32.partialorder %v1441, 8.507059e+37
      %v1443 = vand.u32 %v978, 2147483648
      %v1444 = vor.u32 1.1754944e-38, %v1443
      %v1445 = vsel %vm1442, %v1444, %v1440
      %v1446 = vmul.f32 %v883, %v1445
      %v1447 = vrcp.pop %v981
      %v1448 = vmul.f32 %v981, %v1447
      %v1449 = vsub.f32 1.0, %v1448
      %v1450 = vmul.f32 %v1447, %v1449
      %v1451 = vadd.f32 %v1447, %v1450
      %vm1452 = vweird.f32 %v981
      %vm1453 = vweird.f32 %v1447
      %vm1454 = vmor %vm1452, %vm1453
      %v1455 = vsel %vm1454, %v1447, %v1451
      %v1456 = vand.u32 2147483647, %v981
      %vm1457 = vcmp.eq.f32.partialorder %v1456, 8.507059e+37
      %v1458 = vand.u32 %v981, 2147483648
      %v1459 = vor.u32 1.1754944e-38, %v1458
      %v1460 = vsel %vm1457, %v1459, %v1455
      %v1461 = vmul.f32 %v885, %v1460
      %1462 = vst.msk [vmem:[%s226] sm:$0xff] %vm693, %v996
      %1463 = vst.msk [vmem:[%s226 + $0x8] sm:$0xff] %vm693, %v1011
      %1464 = vst.msk [vmem:[%s226 + $0x10] sm:$0xff] %vm693, %v1026
      %1465 = vst.msk [vmem:[%s226 + $0x18] sm:$0xff] %vm693, %v1041
      %1466 = vst.msk [vmem:[%s226 + $0x20] sm:$0xff] %vm693, %v1056
      %1467 = vst.msk [vmem:[%s226 + $0x28] sm:$0xff] %vm693, %v1071
      %1468 = vst.msk [vmem:[%s226 + $0x30] sm:$0xff] %vm693, %v1086
      %1469 = vst.msk [vmem:[%s226 + $0x38] sm:$0xff] %vm693, %v1101
      %1470 = vst.msk [vmem:[%s226 + $0x40] sm:$0xff] %vm693, %v1116
      %1471 = vst.msk [vmem:[%s226 + $0x48] sm:$0xff] %vm693, %v1131
      %1472 = vst.msk [vmem:[%s226 + $0x50] sm:$0xff] %vm693, %v1146
      %1473 = vst.msk [vmem:[%s226 + $0x58] sm:$0xff] %vm693, %v1161
      %1474 = vst.msk [vmem:[%s226 + $0x60] sm:$0xff] %vm693, %v1176
      %1475 = vst.msk [vmem:[%s226 + $0x68] sm:$0xff] %vm693, %v1191
      %1476 = vst.msk [vmem:[%s226 + $0x70] sm:$0xff] %vm693, %v1206
      %1477 = vst.msk [vmem:[%s226 + $0x78] sm:$0xff] %vm693, %v1221
      %1478 = vst.msk [vmem:[%s226 + $0x80] sm:$0xff] %vm693, %v1236
      %1479 = vst.msk [vmem:[%s226 + $0x88] sm:$0xff] %vm693, %v1251
      %1480 = vst.msk [vmem:[%s226 + $0x90] sm:$0xff] %vm693, %v1266
      %1481 = vst.msk [vmem:[%s226 + $0x98] sm:$0xff] %vm693, %v1281
      %1482 = vst.msk [vmem:[%s226 + $0xa0] sm:$0xff] %vm693, %v1296
      %1483 = vst.msk [vmem:[%s226 + $0xa8] sm:$0xff] %vm693, %v1311
      %1484 = vst.msk [vmem:[%s226 + $0xb0] sm:$0xff] %vm693, %v1326
      %1485 = vst.msk [vmem:[%s226 + $0xb8] sm:$0xff] %vm693, %v1341
      %1486 = vst.msk [vmem:[%s226 + $0xc0] sm:$0xff] %vm693, %v1356
      %1487 = vst.msk [vmem:[%s226 + $0xc8] sm:$0xff] %vm693, %v1371
      %1488 = vst.msk [vmem:[%s226 + $0xd0] sm:$0xff] %vm693, %v1386
      %1489 = vst.msk [vmem:[%s226 + $0xd8] sm:$0xff] %vm693, %v1401
      %1490 = vst.msk [vmem:[%s226 + $0xe0] sm:$0xff] %vm693, %v1416
      %1491 = vst.msk [vmem:[%s226 + $0xe8] sm:$0xff] %vm693, %v1431
      %1492 = vst.msk [vmem:[%s226 + $0xf0] sm:$0xff] %vm693, %v1446
      %1493 = vst.msk [vmem:[%s226 + $0xf8] sm:$0xff] %vm693, %v1461
      %s1494 = smul.u32 32, %s16
      %p1495 = scmp.lt.s32.totalorder %s1494, 63
      %s1496 = scalar_select %p1495, %s1494, 63
      %s1497 = smul.addr %s1496, 8
      %s1498 = scalar_lea.vmem %s5, %s1497
      // Predicated region
      $region41: #{tpu_custom_call.1} parent=39 // pred_check
        %p1499 = pneg %p144
      $region42: #{tpu_custom_call.1} parent=39 // pred_check_branch
        %1501 = sbr.rel (%p1499) target = $region44
      $region43: #{tpu_custom_call.1} parent=39 // pred_region
        %s1502 = smul.u32 32, %s16
      $region44: #{tpu_custom_call.1} parent=39 // pred_fallthru
        _
    $region40: #{tpu_custom_call.1} parent=5 // pred_fallthru
      _
    %p1503 = scmp.le.s32.totalorder 2, %s11
    // Predicated region
    $region45: #{tpu_custom_call.1} parent=5 // pred_check
      %p1504 = pneg %p1503
    $region46: #{tpu_custom_call.1} parent=5 // pred_check_branch
      %1506 = sbr.rel (%p1504) target = $region48
    $region47: #{tpu_custom_call.1} parent=5 // pred_region
      %s1507 = ssub.s32 %s11, 2
      // Predicated region
      $region49: #{tpu_custom_call.1} parent=47 // pred_check
        %p1508 = pneg %p150
      $region50: #{tpu_custom_call.1} parent=47 // pred_check_branch
        %1510 = sbr.rel (%p1508) target = $region52
      $region51: #{tpu_custom_call.1} parent=47 // pred_region
        %s1511 = smul.u32 32, %s17
        %p1512 = scmp.lt.s32.totalorder %s1511, 63
        %s1513 = scalar_select %p1512, %s1511, 63
        %s1514 = smul.addr %s1513, 8
        %s1515 = scalar_lea.vmem %s5, %s1514
      $region52: #{tpu_custom_call.1} parent=47 // pred_fallthru
        _
    $region48: #{tpu_custom_call.1} parent=5 // pred_fallthru
      _
  $region6: #{tpu_custom_call.1} parent=0 // loop_footer
    %s15 = sadd.s32 1, %s11
  $region7: #{tpu_custom_call.1} parent=0 // loop_footer_branch
    %10 = sbr.rel target = $region3
  $region8: #{tpu_custom_call.1} parent=0 // loop_exit
    _

</llo_original>
